<compile_context>
chip_gen: v5e
topology: v5e:2x2
jax: 0.10.0
libtpu: 0.0.40
codegen_flags: <defaults>
</compile_context>

<pallas_src>
import math

import jax
import jax.numpy as jnp
import numpy as np
from jax.experimental import pallas as pl
from jax.experimental.pallas import tpu as pltpu


# ---------------------------------------------------------------------------
# Laplacian helper (plain JAX; one-time preprocessing, identical to PyTorch).
# ---------------------------------------------------------------------------
def calculate_laplacian_with_self_loop(adj: jnp.ndarray) -> jnp.ndarray:
    """D^{-1/2} (A + I) D^{-1/2}, same as the PyTorch helper."""
    m = adj + jnp.eye(adj.shape[0], dtype=adj.dtype)
    row_sum = m.sum(axis=1)
    d_inv_sqrt = jnp.power(row_sum, -0.5)
    d_inv_sqrt = jnp.where(jnp.isinf(d_inv_sqrt), 0.0, d_inv_sqrt)
    d_mat = jnp.diag(d_inv_sqrt)
    return (m @ d_mat).T @ d_mat


# ---------------------------------------------------------------------------
# Hardware-aware sizing helpers.
# ---------------------------------------------------------------------------
_FALLBACK_VMEM_CAP = 64 * 1024 * 1024   # conservative (v7x per-TC VMEM)


def _vmem_capacity_bytes() -> int:
    try:
        info = pltpu.get_tpu_info()
        cap = getattr(info, "vmem_capacity_bytes", None)
        if cap:
            return int(cap)
    except Exception:
        pass
    return _FALLBACK_VMEM_CAP


def _vmem_block_budget() -> int:
    # Byte budget for all (double-buffered) blocks + scratch of one kernel:
    # ~32 MiB on v5e/v6e (128 MiB VMEM), ~16 MiB on v7x (64 MiB VMEM).
    cap = _vmem_capacity_bytes()
    return int(min(max(cap // 4, 8 * 1024 * 1024), 32 * 1024 * 1024))


def _vmem_limit_bytes() -> int:
    # Scoped-VMEM limit handed to Mosaic: above the 16/32 MiB defaults, well
    # below physical so the compiler keeps headroom for its own scratch.
    return int(min(_vmem_capacity_bytes() // 2, 100 * 1024 * 1024))


def _round_up(x: int, m: int) -> int:
    return ((x + m - 1) // m) * m


def _row_granularity(itemsize: int) -> int:
    # bf16 packs two rows per sublane -> 16-row granularity; f32 -> 8.
    return 16 if itemsize < 4 else 8


def _invariant_spec(block_shape, index_map):
    """Grid-invariant operand: constant index_map + single buffering (no
    redundant double-buffer VMEM / DMA).  Falls back to a plain BlockSpec if
    this JAX version lacks `pipeline_mode`."""
    try:
        return pl.BlockSpec(block_shape, index_map, pipeline_mode=pl.Buffered(1))
    except (AttributeError, TypeError):
        return pl.BlockSpec(block_shape, index_map)


# ---------------------------------------------------------------------------
# Generic M/N/K-tiled matmul (+ optional bias) — fallback path for shapes whose
# fused footprint does not fit the per-generation VMEM budget.
# ---------------------------------------------------------------------------
def _mm_kernel(a_ref, b_ref, o_ref, acc_ref):
    @pl.when(pl.program_id(2) == 0)
    def _init():
        acc_ref[...] = jnp.zeros_like(acc_ref)

    acc_ref[...] += jnp.dot(a_ref[...], b_ref[...],
                            preferred_element_type=jnp.float32)

    @pl.when(pl.program_id(2) == pl.num_programs(2) - 1)
    def _finalize():
        o_ref[...] = acc_ref[...].astype(o_ref.dtype)


def _mm_bias_kernel(a_ref, b_ref, bias_ref, o_ref, acc_ref):
    @pl.when(pl.program_id(2) == 0)
    def _init():
        acc_ref[...] = jnp.zeros_like(acc_ref)

    acc_ref[...] += jnp.dot(a_ref[...], b_ref[...],
                            preferred_element_type=jnp.float32)

    @pl.when(pl.program_id(2) == pl.num_programs(2) - 1)
    def _finalize():
        o_ref[...] = (acc_ref[...] + bias_ref[...]).astype(o_ref.dtype)  # f32 bias add


def _choose_mm_tiles(m, k, n, a_item, b_item, o_item, budget):
    row_g = _row_granularity(a_item)
    m_cap = _round_up(max(m, 1), row_g)
    n_cap = _round_up(max(n, 1), 128)
    k_cap = _round_up(max(k, 1), 128)
    tm_cands = [t for t in (512, 256, 128, 64, 32, 16, 8)
                if t % row_g == 0 and t <= m_cap] or [row_g]
    tn_cands = [t for t in (512, 256, 128) if t <= n_cap] or [128]
    tk_cands = [t for t in (1024, 512, 256, 128) if t <= k_cap] or [128]

    def footprint(tm, tn, tk):
        return (2 * tm * tk * a_item        # A blocks (double-buffered)
                + 2 * tk * tn * b_item      # B blocks
                + 2 * tm * tn * o_item      # output blocks
                + tm * tn * 4               # f32 accumulator scratch
                + 2 * tn * 4)               # bias block

    chosen = None
    for tm in tm_cands:
        for tn in tn_cands:
            for tk in tk_cands:
                if footprint(tm, tn, tk) <= budget:
                    chosen = (tm, tn, tk)
                    break
            if chosen:
                break
        if chosen:
            break
    if chosen is None:                       # smallest tiles are always tiny
        chosen = (tm_cands[-1], tn_cands[-1], tk_cands[-1])
    tm, tn, tk = chosen
    # Give v7x's second TensorCore work when both parallel axes would be trivial.
    if -(-m // tm) <= 1 and -(-n // tn) <= 1 and tm >= 2 * row_g:
        tm //= 2
    return tm, tn, tk


def _pallas_matmul(a, b, bias=None, *, out_dtype=jnp.float32):
    """out = a @ b (+ bias), f32 MXU accumulation, M/N/K-tiled, padded (exact)."""
    m, k = a.shape
    k2, n = b.shape
    assert k == k2, (a.shape, b.shape)

    budget = _vmem_block_budget()
    tm, tn, tk = _choose_mm_tiles(m, k, n,
                                  a.dtype.itemsize, b.dtype.itemsize,
                                  jnp.dtype(out_dtype).itemsize, budget)
    m_pad, k_pad, n_pad = _round_up(m, tm), _round_up(k, tk), _round_up(n, tn)

    if (m_pad, k_pad) != (m, k):
        a = jnp.pad(a, ((0, m_pad - m), (0, k_pad - k)))
    if (k_pad, n_pad) != (k, n):
        b = jnp.pad(b, ((0, k_pad - k), (0, n_pad - n)))

    grid = (m_pad // tm, n_pad // tn, k_pad // tk)
    a_spec = pl.BlockSpec((tm, tk), lambda i, j, kk: (i, kk))
    b_spec = pl.BlockSpec((tk, tn), lambda i, j, kk: (kk, j))
    out_spec = pl.BlockSpec((tm, tn), lambda i, j, kk: (i, j))

    if bias is None:
        kernel, in_specs, args = _mm_kernel, [a_spec, b_spec], (a, b)
    else:
        bias2d = bias.astype(jnp.float32).reshape(1, n)
        if n_pad != n:
            bias2d = jnp.pad(bias2d, ((0, 0), (0, n_pad - n)))
        bias_spec = pl.BlockSpec((1, tn), lambda i, j, kk: (0, j))
        kernel, in_specs, args = _mm_bias_kernel, [a_spec, b_spec, bias_spec], (a, b, bias2d)

    out = pl.pallas_call(
        kernel,
        out_shape=jax.ShapeDtypeStruct((m_pad, n_pad), out_dtype),
        grid_spec=pltpu.PrefetchScalarGridSpec(
            num_scalar_prefetch=0,
            grid=grid,
            in_specs=in_specs,
            out_specs=out_spec,
            scratch_shapes=[pltpu.VMEM((tm, tn), jnp.float32)]),
        compiler_params=pltpu.CompilerParams(
            dimension_semantics=("parallel", "parallel", "arbitrary"),
            vmem_limit_bytes=_vmem_limit_bytes()),
    )(*args)

    if (m_pad, n_pad) != (m, n):
        out = out[:m, :n]
    return out


# ---------------------------------------------------------------------------
# Fused TGCN graph-convolution kernel (primary path).
#   grid = (node row tiles "parallel", reduction tiles "arbitrary")
#   l_ref:    (tm, tk)       Laplacian tile
#   c_ref:    (B, tk, F)     concat chunk (natural batch-major layout)
#   w_ref:    (F, O), bias_ref: (1, O)     grid-invariant, single-buffered
#   o_ref:    (B, tm, O)     batch-major output tile (no XLA transposes needed)
#   acc_ref:  (B, tm, F)     f32 accumulator scratch
# ---------------------------------------------------------------------------
def _fused_gconv_kernel(l_ref, c_ref, w_ref, bias_ref, o_ref, acc_ref):
    batch = c_ref.shape[0]
    k_id = pl.program_id(1)

    @pl.when(k_id == 0)
    def _init():
        acc_ref[...] = jnp.zeros_like(acc_ref)

    l_blk = l_ref[...]
    for b in range(batch):                       # static unroll over batch
        acc_ref[b] += jnp.dot(l_blk, c_ref[b],
                              preferred_element_type=jnp.float32)

    @pl.when(k_id == pl.num_programs(1) - 1)
    def _finalize():
        w_blk = w_ref[...]
        bias = bias_ref[...]
        for b in range(batch):
            ax = acc_ref[b].astype(w_blk.dtype)
            o_ref[b] = (jnp.dot(ax, w_blk, preferred_element_type=jnp.float32)
                        + bias).astype(o_ref.dtype)


def _choose_fused_tiles(n_nodes, batch, f, o, c_item, budget):
    """Pick (tm, tk, n_pad) for the fused kernel, or None if it cannot fit the
    per-generation VMEM block budget."""
    row_g = _row_granularity(c_item)
    cap_m = _round_up(max(n_nodes, row_g), 128)
    tm_cands = [t for t in (512, 256, 128, 64, 32, 16, 8)
                if t % row_g == 0 and t <= cap_m] or [row_g]
    tk_cands = [t for t in (512, 256, 128)
                if t <= _round_up(max(n_nodes, 1), 128)] or [128]

    def footprint(tm, tk):
        return (2 * tm * tk * c_item            # Laplacian blocks
                + 2 * batch * tk * f * c_item   # concat blocks
                + 2 * f * o * c_item            # weights
                + 2 * o * 4                     # bias
                + 2 * batch * tm * o * 4        # output blocks (f32)
                + batch * tm * f * 4)           # f32 accumulator scratch

    chosen = None
    for tm in tm_cands:
        for tk in tk_cands:
            if footprint(tm, tk) <= budget:
                chosen = (tm, tk)
                break
        if chosen:
            break
    if chosen is None:
        return None
    tm, tk = chosen
    n_pad = _round_up(n_nodes, max(tm, tk))      # tiles are powers of two
    # Ensure >=2 row tiles so the "parallel" axis can shard across v7x's 2 TCs.
    if n_pad // tm == 1 and tm >= 2 * row_g:
        tm //= 2
    return tm, tk, n_pad


def _tgcn_gconv_fused(lap, concat, weights, bias2d, tm, tk, n_pad):
    batch, n_nodes, f = concat.shape
    _, o = weights.shape

    if n_pad != n_nodes:
        pad = n_pad - n_nodes
        lap = jnp.pad(lap, ((0, pad), (0, pad)))         # zero rows/cols: exact
        concat = jnp.pad(concat, ((0, 0), (0, pad), (0, 0)))

    grid = (n_pad // tm, n_pad // tk)
    l_spec = pl.BlockSpec((tm, tk), lambda i, kk: (i, kk))
    c_spec = pl.BlockSpec((batch, tk, f), lambda i, kk: (0, kk, 0))
    w_spec = _invariant_spec((f, o), lambda i, kk: (0, 0))
    bias_spec = _invariant_spec((1, o), lambda i, kk: (0, 0))
    out_spec = pl.BlockSpec((batch, tm, o), lambda i, kk: (0, i, 0))

    out = pl.pallas_call(
        _fused_gconv_kernel,
        out_shape=jax.ShapeDtypeStruct((batch, n_pad, o), jnp.float32),
        grid_spec=pltpu.PrefetchScalarGridSpec(
            num_scalar_prefetch=0,
            grid=grid,
            in_specs=[l_spec, c_spec, w_spec, bias_spec],
            out_specs=out_spec,
            scratch_shapes=[pltpu.VMEM((batch, tm, f), jnp.float32)]),
        compiler_params=pltpu.CompilerParams(
            dimension_semantics=("parallel", "arbitrary"),
            vmem_limit_bytes=_vmem_limit_bytes()),
    )(lap, concat, weights, bias2d)

    if n_pad != n_nodes:
        out = out[:, :n_nodes, :]
    return out                                   # (B, N, O) batch-major, f32


# ---------------------------------------------------------------------------
# TGCN graph convolution forward.
# ---------------------------------------------------------------------------
def tgcn_graph_convolution(inputs, hidden_state, laplacian, weights, biases,
                           num_gru_units: int, output_dim: int,
                           *, compute_dtype=jnp.float32, use_fused=None):
    """Pallas implementation of TGCNGraphConvolution.forward.

    inputs:       (B, N)      float32
    hidden_state: (B, N * G)  float32
    returns:      (B, N * O)  float32

    compute_dtype: dtype fed to the MXU (jnp.bfloat16 is the fast path on all
    of v5e/v6e/v7x); accumulation and the bias add are always float32.
    use_fused: None = auto, True = force fused if it fits, False = two-stage.
    """
    batch_size, num_nodes = inputs.shape
    g, o = num_gru_units, output_dim
    f = g + 1

    hidden = hidden_state.reshape(batch_size, num_nodes, g)
    concat = jnp.concatenate([inputs[..., None], hidden], axis=2)   # (B, N, F)

    # NOTE: in a full TGCN cell pre-cast the Laplacian once and reuse it across
    # timesteps (constant buffer); the cast here is conditional/no-op for f32.
    lap = laplacian if laplacian.dtype == compute_dtype else laplacian.astype(compute_dtype)
    w = weights if weights.dtype == compute_dtype else weights.astype(compute_dtype)
    bias2d = biases.astype(jnp.float32).reshape(1, o)
    concat_c = concat.astype(compute_dtype)

    c_item = jnp.dtype(compute_dtype).itemsize
    budget = _vmem_block_budget()

    # ---------------- fused single-kernel path ------------------------------
    fused_tiles = None
    if use_fused is not False and batch_size <= 64:   # static batch unroll cap
        fused_tiles = _choose_fused_tiles(num_nodes, batch_size, f, o, c_item, budget)
        if fused_tiles is not None and use_fused is None:
            tm_f, _, n_pad_f = fused_tiles
            if n_pad_f // tm_f > 8:      # concat would be re-streamed too often
                fused_tiles = None
    if fused_tiles is not None:
        out_bno = _tgcn_gconv_fused(lap, concat_c, w, bias2d, *fused_tiles)
        return out_bno.reshape(batch_size, num_nodes * o)

    # ---------------- unfused fallback: two tiled matmuls -------------------
    if o < f and batch_size * o >= 128:
        # Re-associated ordering  out = L @ (concat @ W) + b : fewer FLOPs in
        # the dominant NxN matmul when O < G+1 and the lane axis (B*O) is
        # dense.  Exact in real arithmetic; rounding order differs from the
        # reference (intentional).
        cw = _pallas_matmul(concat_c.reshape(batch_size * num_nodes, f), w,
                            out_dtype=compute_dtype)                   # (B*N, O)
        cw_wide = (cw.reshape(batch_size, num_nodes, o)
                     .transpose(1, 0, 2)
                     .reshape(num_nodes, batch_size * o))              # (N, B*O)
        bias_wide = jnp.tile(biases.astype(jnp.float32), batch_size)   # (B*O,)
        out_wide = _pallas_matmul(lap, cw_wide.astype(compute_dtype),
                                  bias=bias_wide)                      # (N, B*O) f32
        out = (out_wide.reshape(num_nodes, batch_size, o)
                       .transpose(1, 0, 2)
                       .reshape(batch_size, num_nodes * o))
    else:
        # Reference ordering: out = (L @ concat) @ W + b.
        x_wide = (concat_c.transpose(1, 0, 2)
                          .reshape(num_nodes, batch_size * f))         # (N, B*F)
        ax_wide = _pallas_matmul(lap, x_wide, out_dtype=compute_dtype) # (N, B*F)
        ax_flat = (ax_wide.reshape(num_nodes, batch_size, f)
                          .transpose(1, 0, 2)
                          .reshape(batch_size * num_nodes, f))
        out_flat = _pallas_matmul(ax_flat, w, bias=biases)             # (B*N, O) f32
        out = out_flat.reshape(batch_size, num_nodes * o)
    return out


# ---------------------------------------------------------------------------
# Pure-JAX transcription of the PyTorch forward (for verification).
# ---------------------------------------------------------------------------
def _reference(inputs, hidden_state, laplacian, weights, biases,
               num_gru_units, output_dim):
    hp = jax.lax.Precision.HIGHEST
    batch_size, num_nodes = inputs.shape
    g, o = num_gru_units, output_dim
    x = inputs.reshape(batch_size, num_nodes, 1)
    h = hidden_state.reshape(batch_size, num_nodes, g)
    cat = jnp.concatenate([x, h], axis=2)                         # (B, N, G+1)
    cat = jnp.transpose(cat, (1, 2, 0)).reshape(num_nodes, (g + 1) * batch_size)
    a_cat = jnp.matmul(laplacian, cat, precision=hp)
    a_cat = a_cat.reshape(num_nodes, g + 1, batch_size)
    a_cat = jnp.transpose(a_cat, (2, 0, 1)).reshape(batch_size * num_nodes, g + 1)
    out = jnp.matmul(a_cat, weights, precision=hp) + biases
    return out.reshape(batch_size, num_nodes * o)


if __name__ == "__main__":
    key = jax.random.PRNGKey(0)

    def make_adj(k, n):
        raw = jax.random.uniform(k, (n, n), dtype=jnp.float32)
        adj = (raw + raw.T) * 0.5
        return adj * (1.0 - jnp.eye(n, dtype=jnp.float32))

    def make_params(k, fan_in, out_dim):
        bound = math.sqrt(6.0 / (fan_in + out_dim))            # xavier_uniform_
        w = jax.random.uniform(k, (fan_in, out_dim), jnp.float32, -bound, bound)
        b = jnp.full((out_dim,), 0.1, jnp.float32)             # constant bias init
        return w, b

    fwd = jax.jit(tgcn_graph_convolution,
                  static_argnames=("num_gru_units", "output_dim",
                                   "compute_dtype", "use_fused"))

    def check(out, ref, tol=1e-4):
        np.testing.assert_allclose(np.asarray(out), np.asarray(ref),
                                   rtol=tol, atol=tol)

    # --- problem: B=2 batches, N=16 graph nodes, G=32 GRU units -------------
    B, N, G = 2, 16, 32
    k_adj, k_in, k_hid, k_w1, k_w2, key = jax.random.split(key, 6)
    lap = calculate_laplacian_with_self_loop(make_adj(k_adj, N))
    x = jax.random.normal(k_in, (B, N), jnp.float32)
    h = jax.random.normal(k_hid, (B, N * G), jnp.float32)

    # Case 1: fused kernel, f32, small output dim.
    O1 = 8
    w1, b1 = make_params(k_w1, G + 1, O1)
    out1 = jax.block_until_ready(
        fwd(x, h, lap, w1, b1, num_gru_units=G, output_dim=O1))
    ref1 = _reference(x, h, lap, w1, b1, G, O1)
    check(out1, ref1)

    # Case 2: fused kernel, gate-layer output dim (O = 2G).
    O2 = 2 * G
    w2, b2 = make_params(k_w2, G + 1, O2)
    out2 = jax.block_until_ready(
        fwd(x, h, lap, w2, b2, num_gru_units=G, output_dim=O2))
    check(out2, _reference(x, h, lap, w2, b2, G, O2))

    # Case 3: fused kernel, bf16 MXU operands, f32 accumulation.
    out3 = jax.block_until_ready(
        fwd(x, h, lap, w1, b1, num_gru_units=G, output_dim=O1,
            compute_dtype=jnp.bfloat16))
    rel = (np.linalg.norm(np.asarray(out3) - np.asarray(ref1)) /
           (np.linalg.norm(np.asarray(ref1)) + 1e-12))
    assert rel < 2e-2, f"bf16 relative error too large: {rel}"

    # Case 4: unfused fallback (generic M/N/K-tiled matmuls), reference order.
    out4 = jax.block_until_ready(
        fwd(x, h, lap, w1, b1, num_gru_units=G, output_dim=O1, use_fused=False))
    check(out4, ref1)

    # Case 5: unfused fallback, re-associated ordering (B*O >= 128, O < G+1).
    B5, O5 = 8, 16
    k_in5, k_hid5, k_w5, key = jax.random.split(key, 4)
    x5 = jax.random.normal(k_in5, (B5, N), jnp.float32)
    h5 = jax.random.normal(k_hid5, (B5, N * G), jnp.float32)
    w5, b5 = make_params(k_w5, G + 1, O5)
    out5 = jax.block_until_ready(
        fwd(x5, h5, lap, w5, b5, num_gru_units=G, output_dim=O5, use_fused=False))
    check(out5, _reference(x5, h5, lap, w5, b5, G, O5))

    # Case 6: larger graph exercising the K (reduction) grid axis of the fused
    # kernel and its accumulator init/finalize logic.
    N6 = 300
    k_adj6, k_in6, k_hid6, k_w6, key = jax.random.split(key, 5)
    lap6 = calculate_laplacian_with_self_loop(make_adj(k_adj6, N6))
    x6 = jax.random.normal(k_in6, (B, N6), jnp.float32)
    h6 = jax.random.normal(k_hid6, (B, N6 * G), jnp.float32)
    w6, b6 = make_params(k_w6, G + 1, O1)
    out6 = jax.block_until_ready(
        fwd(x6, h6, lap6, w6, b6, num_gru_units=G, output_dim=O1))
    check(out6, _reference(x6, h6, lap6, w6, b6, G, O1))

    print("KERNEL_OK")
</pallas_src>

<mosaic_0001>
module attributes {stable_mosaic.version = 11 : i64} {
  func.func @_fused_gconv_kernel(%arg0: i32, %arg1: i32, %arg2: memref<64x128xf32, #tpu.memory_space<vmem>>, %arg3: memref<2x128x33xf32, #tpu.memory_space<vmem>>, %arg4: memref<33x8xf32, #tpu.memory_space<vmem>>, %arg5: memref<1x8xf32, #tpu.memory_space<vmem>>, %arg6: memref<2x64x8xf32, #tpu.memory_space<vmem>>, %arg7: memref<2x64x33xf32, #tpu.memory_space<vmem>>) attributes {dimension_semantics = [#tpu.dimension_semantics<parallel>, #tpu.dimension_semantics<arbitrary>], iteration_bounds = array<i64: 2, 1>, scalar_prefetch = 0 : i64, scratch_operands = 1 : i64, tpu.core_type = #tpu.core_type<tc>, window_params = [{transform_indices = @transform_0, window_bounds = array<i64: 64, 128>}, {transform_indices = @transform_1, window_bounds = array<i64: 2, 128, 33>}, {pipeline_mode = #tpu.pipeline_mode<synchronous>, transform_indices = @transform_2, window_bounds = array<i64: 33, 8>}, {pipeline_mode = #tpu.pipeline_mode<synchronous>, transform_indices = @transform_3, window_bounds = array<i64: 1, 8>}, {transform_indices = @transform_4, window_bounds = array<i64: 2, 64, 8>}]} {
    %c0_i32 = arith.constant 0 : i32
    %0 = arith.cmpi eq, %arg1, %c0_i32 : i32
    %1 = arith.extui %0 : i1 to i32
    %c0_i32_0 = arith.constant 0 : i32
    %2 = arith.cmpi ne, %1, %c0_i32_0 : i32
    scf.if %2 {
      %cst_22 = arith.constant 0.000000e+00 : f32
      %25 = vector.broadcast %cst_22 : f32 to vector<2x64x33xf32>
      %c0_23 = arith.constant 0 : index
      %c0_24 = arith.constant 0 : index
      %c0_25 = arith.constant 0 : index
      %26 = vector.load %arg7[%c0_23, %c0_24, %c0_25] : memref<2x64x33xf32, #tpu.memory_space<vmem>>, vector<2x64x33xf32>
      tpu.vector_store %arg7[%c0_23, %c0_24, %c0_25], %25 {strides = array<i32>} : memref<2x64x33xf32, #tpu.memory_space<vmem>>, vector<2x64x33xf32>,
    } else {
    }
    %c0 = arith.constant 0 : index
    %c0_1 = arith.constant 0 : index
    %3 = vector.load %arg2[%c0, %c0_1] : memref<64x128xf32, #tpu.memory_space<vmem>>, vector<64x128xf32>
    %c0_2 = arith.constant 0 : index
    %c0_3 = arith.constant 0 : index
    %c0_4 = arith.constant 0 : index
    %4 = vector.load %arg7[%c0_2, %c0_3, %c0_4] : memref<2x64x33xf32, #tpu.memory_space<vmem>>, vector<1x64x33xf32>
    %5 = vector.shape_cast %4 : vector<1x64x33xf32> to vector<64x33xf32>
    %c0_5 = arith.constant 0 : index
    %c0_6 = arith.constant 0 : index
    %c0_7 = arith.constant 0 : index
    %6 = vector.load %arg3[%c0_5, %c0_6, %c0_7] : memref<2x128x33xf32, #tpu.memory_space<vmem>>, vector<1x128x33xf32>
    %7 = vector.shape_cast %6 : vector<1x128x33xf32> to vector<128x33xf32>
    %cst = arith.constant dense<0.000000e+00> : vector<64x33xf32>
    %8 = tpu.matmul %3, %7, %cst {dimension_numbers = #tpu.dot_dimension_numbers<[1], [0], [0], [1], [0, 0, 1, 1], [], []>} : vector<64x128xf32>, vector<128x33xf32>, vector<64x33xf32> -> vector<64x33xf32>
    %9 = arith.addf %5, %8 : vector<64x33xf32>
    %c0_8 = arith.constant 0 : index
    %c0_9 = arith.constant 0 : index
    %c0_10 = arith.constant 0 : index
    %10 = vector.load %arg7[%c0_8, %c0_9, %c0_10] : memref<2x64x33xf32, #tpu.memory_space<vmem>>, vector<1x64x33xf32>
    %11 = vector.shape_cast %10 : vector<1x64x33xf32> to vector<64x33xf32>
    %12 = vector.shape_cast %9 : vector<64x33xf32> to vector<1x64x33xf32>
    tpu.vector_store %arg7[%c0_8, %c0_9, %c0_10], %12 {strides = array<i32>} : memref<2x64x33xf32, #tpu.memory_space<vmem>>, vector<1x64x33xf32>,
    %c1 = arith.constant 1 : index
    %c0_11 = arith.constant 0 : index
    %c0_12 = arith.constant 0 : index
    %13 = vector.load %arg7[%c1, %c0_11, %c0_12] : memref<2x64x33xf32, #tpu.memory_space<vmem>>, vector<1x64x33xf32>
    %14 = vector.shape_cast %13 : vector<1x64x33xf32> to vector<64x33xf32>
    %c1_13 = arith.constant 1 : index
    %c0_14 = arith.constant 0 : index
    %c0_15 = arith.constant 0 : index
    %15 = vector.load %arg3[%c1_13, %c0_14, %c0_15] : memref<2x128x33xf32, #tpu.memory_space<vmem>>, vector<1x128x33xf32>
    %16 = vector.shape_cast %15 : vector<1x128x33xf32> to vector<128x33xf32>
    %cst_16 = arith.constant dense<0.000000e+00> : vector<64x33xf32>
    %17 = tpu.matmul %3, %16, %cst_16 {dimension_numbers = #tpu.dot_dimension_numbers<[1], [0], [0], [1], [0, 0, 1, 1], [], []>} : vector<64x128xf32>, vector<128x33xf32>, vector<64x33xf32> -> vector<64x33xf32>
    %18 = arith.addf %14, %17 : vector<64x33xf32>
    %c1_17 = arith.constant 1 : index
    %c0_18 = arith.constant 0 : index
    %c0_19 = arith.constant 0 : index
    %19 = vector.load %arg7[%c1_17, %c0_18, %c0_19] : memref<2x64x33xf32, #tpu.memory_space<vmem>>, vector<1x64x33xf32>
    %20 = vector.shape_cast %19 : vector<1x64x33xf32> to vector<64x33xf32>
    %21 = vector.shape_cast %18 : vector<64x33xf32> to vector<1x64x33xf32>
    tpu.vector_store %arg7[%c1_17, %c0_18, %c0_19], %21 {strides = array<i32>} : memref<2x64x33xf32, #tpu.memory_space<vmem>>, vector<1x64x33xf32>,
    %c0_i32_20 = arith.constant 0 : i32
    %22 = arith.cmpi eq, %arg1, %c0_i32_20 : i32
    %23 = arith.extui %22 : i1 to i32
    %c0_i32_21 = arith.constant 0 : i32
    %24 = arith.cmpi ne, %23, %c0_i32_21 : i32
    scf.if %24 {
      %c0_22 = arith.constant 0 : index
      %c0_23 = arith.constant 0 : index
      %25 = vector.load %arg4[%c0_22, %c0_23] : memref<33x8xf32, #tpu.memory_space<vmem>>, vector<33x8xf32>
      %c0_24 = arith.constant 0 : index
      %c0_25 = arith.constant 0 : index
      %26 = vector.load %arg5[%c0_24, %c0_25] : memref<1x8xf32, #tpu.memory_space<vmem>>, vector<1x8xf32>
      %c0_26 = arith.constant 0 : index
      %c0_27 = arith.constant 0 : index
      %c0_28 = arith.constant 0 : index
      %27 = vector.load %arg7[%c0_26, %c0_27, %c0_28] : memref<2x64x33xf32, #tpu.memory_space<vmem>>, vector<1x64x33xf32>
      %28 = vector.shape_cast %27 : vector<1x64x33xf32> to vector<64x33xf32>
      %cst_29 = arith.constant dense<0.000000e+00> : vector<64x8xf32>
      %29 = tpu.matmul %28, %25, %cst_29 {dimension_numbers = #tpu.dot_dimension_numbers<[1], [0], [0], [1], [0, 0, 1, 1], [], []>} : vector<64x33xf32>, vector<33x8xf32>, vector<64x8xf32> -> vector<64x8xf32>
      %30 = vector.broadcast %26 : vector<1x8xf32> to vector<64x8xf32>
      %31 = arith.addf %29, %30 : vector<64x8xf32>
      %c0_30 = arith.constant 0 : index
      %c0_31 = arith.constant 0 : index
      %c0_32 = arith.constant 0 : index
      %32 = vector.load %arg6[%c0_30, %c0_31, %c0_32] : memref<2x64x8xf32, #tpu.memory_space<vmem>>, vector<1x64x8xf32>
      %33 = vector.shape_cast %32 : vector<1x64x8xf32> to vector<64x8xf32>
      %34 = vector.shape_cast %31 : vector<64x8xf32> to vector<1x64x8xf32>
      tpu.vector_store %arg6[%c0_30, %c0_31, %c0_32], %34 {strides = array<i32>} : memref<2x64x8xf32, #tpu.memory_space<vmem>>, vector<1x64x8xf32>,
      %c1_33 = arith.constant 1 : index
      %c0_34 = arith.constant 0 : index
      %c0_35 = arith.constant 0 : index
      %35 = vector.load %arg7[%c1_33, %c0_34, %c0_35] : memref<2x64x33xf32, #tpu.memory_space<vmem>>, vector<1x64x33xf32>
      %36 = vector.shape_cast %35 : vector<1x64x33xf32> to vector<64x33xf32>
      %cst_36 = arith.constant dense<0.000000e+00> : vector<64x8xf32>
      %37 = tpu.matmul %36, %25, %cst_36 {dimension_numbers = #tpu.dot_dimension_numbers<[1], [0], [0], [1], [0, 0, 1, 1], [], []>} : vector<64x33xf32>, vector<33x8xf32>, vector<64x8xf32> -> vector<64x8xf32>
      %38 = vector.broadcast %26 : vector<1x8xf32> to vector<64x8xf32>
      %39 = arith.addf %37, %38 : vector<64x8xf32>
      %c1_37 = arith.constant 1 : index
      %c0_38 = arith.constant 0 : index
      %c0_39 = arith.constant 0 : index
      %40 = vector.load %arg6[%c1_37, %c0_38, %c0_39] : memref<2x64x8xf32, #tpu.memory_space<vmem>>, vector<1x64x8xf32>
      %41 = vector.shape_cast %40 : vector<1x64x8xf32> to vector<64x8xf32>
      %42 = vector.shape_cast %39 : vector<64x8xf32> to vector<1x64x8xf32>
      tpu.vector_store %arg6[%c1_37, %c0_38, %c0_39], %42 {strides = array<i32>} : memref<2x64x8xf32, #tpu.memory_space<vmem>>, vector<1x64x8xf32>,
    } else {
    }
    return
  }
  func.func @transform_0(%arg0: i32, %arg1: i32) -> (i32, i32) {
    %c0_i32 = arith.constant 0 : i32
    return %arg0, %arg1 : i32, i32
  }
  func.func @transform_1(%arg0: i32, %arg1: i32) -> (i32, i32, i32) {
    %c0_i32 = arith.constant 0 : i32
    %c0_i32_0 = arith.constant 0 : i32
    %c0_i32_1 = arith.constant 0 : i32
    return %c0_i32, %arg1, %c0_i32_0 : i32, i32, i32
  }
  func.func @transform_2(%arg0: i32, %arg1: i32) -> (i32, i32) {
    %c0_i32 = arith.constant 0 : i32
    %c0_i32_0 = arith.constant 0 : i32
    %c0_i32_1 = arith.constant 0 : i32
    return %c0_i32, %c0_i32_0 : i32, i32
  }
  func.func @transform_3(%arg0: i32, %arg1: i32) -> (i32, i32) {
    %c0_i32 = arith.constant 0 : i32
    %c0_i32_0 = arith.constant 0 : i32
    %c0_i32_1 = arith.constant 0 : i32
    return %c0_i32, %c0_i32_0 : i32, i32
  }
  func.func @transform_4(%arg0: i32, %arg1: i32) -> (i32, i32, i32) {
    %c0_i32 = arith.constant 0 : i32
    %c0_i32_0 = arith.constant 0 : i32
    %c0_i32_1 = arith.constant 0 : i32
    return %c0_i32, %arg0, %c0_i32_0 : i32, i32, i32
  }
}

</mosaic_0001>

<llo_original>
// kernel: tgcn_graph_convolution.1
$region0: #{tgcn_graph_convolution.1}
  #allocation0 [shape = 'u32[]', space=smem, size = 0x4, offset = 0x4, fixed_abs, tag = 'smem constant byte address 0x4 - core index']
  #allocation1 [shape = 'u32[72,128]{1,0:T(1,128)}', space=vmem, size = 0x9000, scoped, tag = 'internal scratch']
  #allocation2 [shape = 'f32[2,64,33]{2,1,0:T(8,128)}', space=vmem, size = 0x10000, scoped, tag = 'scratch operand']
  %s0 = inlined_call_operand.vmem [shape: f32[128,128], index: 0, kind: input, shape index: {}]
  %s1 = inlined_call_operand.vmem [shape: f32[2,128,33], index: 1, kind: input, shape index: {}]
  %s2 = inlined_call_operand.vmem [shape: f32[33,8], index: 2, kind: input, shape index: {}]
  %s3 = inlined_call_operand.vmem [shape: f32[1,8], index: 3, kind: input, shape index: {}]
  %s4 = inlined_call_operand.vmem [shape: f32[2,128,8], index: 4, kind: output, shape index: {}]
  %s5 = sld [smem:[#allocation0]]
  $region91: #{tgcn_graph_convolution.1} parent=0
    _
  %s7 = ssub.s32 1, %s5
  %s8 = scalar_select 0, %s7, %s5
  $region1: #{tgcn_graph_convolution.1} parent=0
    #allocation3 [shape = 'u8[131072]{0}', space=vmem, size = 0x20000, scoped, tag = 'output window, operand 0']
    loop: start=0, step=1, limit=4
    $region2: #{tgcn_graph_convolution.1} parent=1 // loop_pre_header
      _
    $region3: #{tgcn_graph_convolution.1} parent=1 // loop_header
      %s10 = sphi 0, %s14
      %p11 = scmp.ge.s32.totalorder %s10, 4
      %s17 = sphi 0, %s29
      %s18 = sphi 0, %s25
      %s19 = sphi 0, %s17
      %s20 = sphi 0, %s18
      %s21 = sphi 0, %s19
      %s22 = sphi 0, %s20
      %s34 = sphi 0, %s36
      %s37 = sphi 0, %s34
      %s38 = sphi 0, %s37
      %s54 = sphi 0, %s38
      %s60 = sphi 0, %s62
      %s63 = sphi 0, %s60
      %s64 = sphi 0, %s63
      %s80 = sphi 0, %s64
      %s84 = sphi 0, %s84
      %s86 = sphi 0, %s84
      %s87 = sphi 0, %s86
      %s101 = sphi 0, %s87
      %s105 = sphi 0, %s105
      %s107 = sphi 0, %s105
      %s108 = sphi 0, %s107
      %s122 = sphi 0, %s108
      %s128 = sphi 0, %s130
      %s131 = sphi 0, %s128
      %s132 = sphi 0, %s131
      %s148 = sphi 0, %s132
    $region4: #{tgcn_graph_convolution.1} parent=1 // loop_header_branch
      %13 = sbr.rel (%p11) target = $region8
    $region5: #{tgcn_graph_convolution.1} parent=1 // loop_body
      %s15 = ssub.s32 %s10, 1
      %s16 = ssub.s32 %s10, 2
      %s23 = sadd.s32 1, %s18
      %p24 = scmp.ge.s32.totalorder %s23, 1
      %s25 = scalar_select %p24, 0, %s23
      %s26 = sadd.s32 1, %s17
      %s27 = scalar_select %p24, %s26, %s17
      %p28 = scmp.ge.s32.totalorder %s27, 2
      %s29 = scalar_select %p28, 0, %s27
      %s30 = ssub.s32 %s17, %s29
      %s31 = ssub.s32 %s18, %s25
      %s32 = sor.u32 %s30, %s31
      %p33 = scmp.eq.s32.totalorder %s32, 0
      %s35 = sadd.s32 %s34, 1
      %s36 = scalar_select %p33, %s34, %s35
      %p39 = pneg %p33
      %p40 = scmp.eq.s32.totalorder %s10, 1
      %p41 = por %p39, %p40
      %p42 = scmp.ne.s32.totalorder %s34, %s37
      %p43 = scmp.eq.s32.totalorder %s10, 0
      %p44 = por %p42, %p43
      %p45 = scmp.ne.s32.totalorder %s34, %s37
      %p46 = scmp.eq.s32.totalorder %s15, 1
      %p47 = por %p45, %p46
      %p48 = scmp.ne.s32.totalorder %s37, %s38
      %p49 = scmp.eq.s32.totalorder %s15, 0
      %p50 = por %p48, %p49
      %p51 = scmp.ne.s32.totalorder %s37, %s38
      %p52 = scmp.eq.s32.totalorder %s16, 1
      %p53 = por %p51, %p52
      %p55 = scmp.ne.s32.totalorder %s38, %s54
      %p56 = scmp.eq.s32.totalorder %s16, 0
      %p57 = por %p55, %p56
      %s58 = ssub.s32 %s18, %s25
      %p59 = scmp.eq.s32.totalorder %s58, 0
      %s61 = sadd.s32 %s60, 1
      %s62 = scalar_select %p59, %s60, %s61
      %p65 = pneg %p59
      %p66 = scmp.eq.s32.totalorder %s10, 1
      %p67 = por %p65, %p66
      %p68 = scmp.ne.s32.totalorder %s60, %s63
      %p69 = scmp.eq.s32.totalorder %s10, 0
      %p70 = por %p68, %p69
      %p71 = scmp.ne.s32.totalorder %s60, %s63
      %p72 = scmp.eq.s32.totalorder %s15, 1
      %p73 = por %p71, %p72
      %p74 = scmp.ne.s32.totalorder %s63, %s64
      %p75 = scmp.eq.s32.totalorder %s15, 0
      %p76 = por %p74, %p75
      %p77 = scmp.ne.s32.totalorder %s63, %s64
      %p78 = scmp.eq.s32.totalorder %s16, 1
      %p79 = por %p77, %p78
      %p81 = scmp.ne.s32.totalorder %s64, %s80
      %p82 = scmp.eq.s32.totalorder %s16, 0
      %p83 = por %p81, %p82
      %s85 = sadd.s32 %s84, 1
      %p88 = scmp.eq.s32.totalorder %s10, 1
      %p89 = scmp.ne.s32.totalorder %s84, %s86
      %p90 = scmp.eq.s32.totalorder %s10, 0
      %p91 = por %p89, %p90
      %p92 = scmp.ne.s32.totalorder %s84, %s86
      %p93 = scmp.eq.s32.totalorder %s15, 1
      %p94 = por %p92, %p93
      %p95 = scmp.ne.s32.totalorder %s86, %s87
      %p96 = scmp.eq.s32.totalorder %s15, 0
      %p97 = por %p95, %p96
      %p98 = scmp.ne.s32.totalorder %s86, %s87
      %p99 = scmp.eq.s32.totalorder %s16, 1
      %p100 = por %p98, %p99
      %p102 = scmp.ne.s32.totalorder %s87, %s101
      %p103 = scmp.eq.s32.totalorder %s16, 0
      %p104 = por %p102, %p103
      %s106 = sadd.s32 %s105, 1
      %p109 = scmp.eq.s32.totalorder %s10, 1
      %p110 = scmp.ne.s32.totalorder %s105, %s107
      %p111 = scmp.eq.s32.totalorder %s10, 0
      %p112 = por %p110, %p111
      %p113 = scmp.ne.s32.totalorder %s105, %s107
      %p114 = scmp.eq.s32.totalorder %s15, 1
      %p115 = por %p113, %p114
      %p116 = scmp.ne.s32.totalorder %s107, %s108
      %p117 = scmp.eq.s32.totalorder %s15, 0
      %p118 = por %p116, %p117
      %p119 = scmp.ne.s32.totalorder %s107, %s108
      %p120 = scmp.eq.s32.totalorder %s16, 1
      %p121 = por %p119, %p120
      %p123 = scmp.ne.s32.totalorder %s108, %s122
      %p124 = scmp.eq.s32.totalorder %s16, 0
      %p125 = por %p123, %p124
      %s126 = ssub.s32 %s17, %s29
      %p127 = scmp.eq.s32.totalorder %s126, 0
      %s129 = sadd.s32 %s128, 1
      %s130 = scalar_select %p127, %s128, %s129
      %p133 = pneg %p127
      %p134 = scmp.eq.s32.totalorder %s10, 1
      %p135 = por %p133, %p134
      %p136 = scmp.ne.s32.totalorder %s128, %s131
      %p137 = scmp.eq.s32.totalorder %s10, 0
      %p138 = por %p136, %p137
      %p139 = scmp.ne.s32.totalorder %s128, %s131
      %p140 = scmp.eq.s32.totalorder %s15, 1
      %p141 = por %p139, %p140
      %p142 = scmp.ne.s32.totalorder %s131, %s132
      %p143 = scmp.eq.s32.totalorder %s15, 0
      %p144 = por %p142, %p143
      %p145 = scmp.ne.s32.totalorder %s131, %s132
      %p146 = scmp.eq.s32.totalorder %s16, 1
      %p147 = por %p145, %p146
      %p149 = scmp.ne.s32.totalorder %s132, %s148
      %p150 = scmp.eq.s32.totalorder %s16, 0
      %p151 = por %p149, %p150
      %p152 = scmp.le.s32.totalorder 1, %s10
      %p153 = scmp.lt.s32.totalorder %s10, 3
      %p154 = pnand %p152, %p153
      %p155 = pneg %p154
      // Predicated region
      $region9: #{tgcn_graph_convolution.1} parent=5 // pred_check
        _
      $region10: #{tgcn_graph_convolution.1} parent=5 // pred_check_branch
        %157 = sbr.rel (%p154) target = $region12
      $region11: #{tgcn_graph_convolution.1} parent=5 // pred_region
        %s158 = ssub.s32 %s10, 1
        // Predicated region
        $region13: #{tgcn_graph_convolution.1} parent=11 // pred_check
          %p159 = pneg %p76
        $region14: #{tgcn_graph_convolution.1} parent=11 // pred_check_branch
          %161 = sbr.rel (%p159) target = $region16
        $region15: #{tgcn_graph_convolution.1} parent=11 // pred_region
          %s162 = smul.u32 16, %s20
          %p163 = scmp.lt.s32.totalorder %s162, 15
          %s164 = scalar_select %p163, %s162, 15
          %s165 = smul.addr %s164, 8
          %s166 = scalar_lea.vmem %s1, %s165
          %s167 = smul.u32 16, %s20
        $region16: #{tgcn_graph_convolution.1} parent=11 // pred_fallthru
          _
        // Predicated region
        $region17: #{tgcn_graph_convolution.1} parent=11 // pred_check
          %p168 = pneg %p97
        $region18: #{tgcn_graph_convolution.1} parent=11 // pred_check_branch
          %170 = sbr.rel (%p168) target = $region20
        $region19: #{tgcn_graph_convolution.1} parent=11 // pred_region
          _
        $region20: #{tgcn_graph_convolution.1} parent=11 // pred_fallthru
          _
        // Predicated region
        $region21: #{tgcn_graph_convolution.1} parent=11 // pred_check
          %p171 = pneg %p118
        $region22: #{tgcn_graph_convolution.1} parent=11 // pred_check_branch
          %173 = sbr.rel (%p171) target = $region24
        $region23: #{tgcn_graph_convolution.1} parent=11 // pred_region
          _
        $region24: #{tgcn_graph_convolution.1} parent=11 // pred_fallthru
          _
      $region12: #{tgcn_graph_convolution.1} parent=5 // pred_fallthru
        _
      %p174 = scmp.lt.s32.totalorder %s10, 2
      // Predicated region
      $region25: #{tgcn_graph_convolution.1} parent=5 // pred_check
        %p175 = pneg %p174
      $region26: #{tgcn_graph_convolution.1} parent=5 // pred_check_branch
        %177 = sbr.rel (%p175) target = $region28
      $region27: #{tgcn_graph_convolution.1} parent=5 // pred_region
        // Predicated region
        $region29: #{tgcn_graph_convolution.1} parent=27 // pred_check
          %p178 = pneg %p44
        $region30: #{tgcn_graph_convolution.1} parent=27 // pred_check_branch
          %180 = sbr.rel (%p178) target = $region32
        $region31: #{tgcn_graph_convolution.1} parent=27 // pred_region
          %s181 = smul.u32 8, %s17
          %p182 = scmp.lt.s32.totalorder %s181, 15
          %s183 = scalar_select %p182, %s181, 15
          %p184 = scmp.lt.s32.totalorder %s18, 0
          %s185 = scalar_select %p184, %s18, 0
          %s186 = sadd.s32 %s185, %s183
          %s187 = smul.addr %s186, 8
          %s188 = scalar_lea.vmem %s0, %s187
          %s189 = smul.u32 8, %s17
        $region32: #{tgcn_graph_convolution.1} parent=27 // pred_fallthru
          _
      $region28: #{tgcn_graph_convolution.1} parent=5 // pred_fallthru
        _
      %p190 = scmp.le.s32.totalorder 1, %s10
      %p191 = scmp.lt.s32.totalorder %s10, 3
      %p192 = pnand %p190, %p191
      %p193 = pneg %p192
      // Predicated region
      $region33: #{tgcn_graph_convolution.1} parent=5 // pred_check
        _
      $region34: #{tgcn_graph_convolution.1} parent=5 // pred_check_branch
        %195 = sbr.rel (%p192) target = $region36
      $region35: #{tgcn_graph_convolution.1} parent=5 // pred_region
        %s196 = ssub.s32 %s10, 1
        %s197 = smul.u32 8, %s19
        %p198 = scmp.lt.s32.totalorder %s197, 15
        %s199 = scalar_select %p198, %s197, 15
        %p200 = scmp.lt.s32.totalorder %s20, 0
        %s201 = scalar_select %p200, %s20, 0
        %s202 = sadd.s32 %s201, %s199
        %s203 = smul.addr %s202, 8
        %s204 = scalar_lea.vmem %s0, %s203
        %p205 = pneg %p50
        %p206 = pneg %p47
        %s207 = smul.u32 16, %s20
        %p208 = scmp.lt.s32.totalorder %s207, 15
        %s209 = scalar_select %p208, %s207, 15
        %s210 = smul.addr %s209, 8
        %s211 = scalar_lea.vmem %s1, %s210
        %p212 = pneg %p76
        %p213 = pneg %p73
        %p214 = pneg %p97
        %p215 = pneg %p94
        %p216 = pneg %p118
        %p217 = pneg %p115
        %p218 = pneg %p144
        %p219 = pneg %p141
        %s220 = sand.u32 %s131, 1
        %s221 = sand.u32 %s131, 1
        %s222 = smul.addr %s221, 128
        %s223 = scalar_lea.vmem [#allocation3], %s222
        %s224 = smul.u32 8, %s19
        %p225 = scmp.lt.s32.totalorder %s224, 15
        %s226 = scalar_select %p225, %s224, 15
        %p227 = scmp.lt.s32.totalorder %s20, 0
        %s228 = scalar_select %p227, %s20, 0
        %s229 = sadd.s32 %s228, %s226
        %s230 = smul.addr %s229, 8
        %s231 = scalar_lea.vmem %s0, %s230
        %s232 = smul.u32 8, %s19
        %s233 = smul.u32 16, %s20
        %p234 = scmp.lt.s32.totalorder %s233, 15
        %s235 = scalar_select %p234, %s233, 15
        %s236 = smul.addr %s235, 8
        %s237 = scalar_lea.vmem %s1, %s236
        %s238 = smul.u32 16, %s20
        %s239 = smul.u32 8, %s19
        %p240 = scmp.eq.s32.totalorder %s20, 0
        // Predicated region
        $region37: #{tgcn_graph_convolution.1} parent=35 // pred_check
          %p241 = pneg %p240
        $region38: #{tgcn_graph_convolution.1} parent=35 // pred_check_branch
          %243 = sbr.rel (%p241) target = $region40
        $region39: #{tgcn_graph_convolution.1} parent=35 // pred_region
          %vm244 = vcmask 269312
          %245 = vst.msk [vmem:[#allocation2] sm:$0xff] %vm244, 0.0
          %246 = vst.msk [vmem:[#allocation2 + $0x8] sm:$0xff] %vm244, 0.0
          %247 = vst.msk [vmem:[#allocation2 + $0x10] sm:$0xff] %vm244, 0.0
          %248 = vst.msk [vmem:[#allocation2 + $0x18] sm:$0xff] %vm244, 0.0
          %249 = vst.msk [vmem:[#allocation2 + $0x20] sm:$0xff] %vm244, 0.0
          %250 = vst.msk [vmem:[#allocation2 + $0x28] sm:$0xff] %vm244, 0.0
          %251 = vst.msk [vmem:[#allocation2 + $0x30] sm:$0xff] %vm244, 0.0
          %252 = vst.msk [vmem:[#allocation2 + $0x38] sm:$0xff] %vm244, 0.0
          %253 = vst.msk [vmem:[#allocation2 + $0x40] sm:$0xff] %vm244, 0.0
          %254 = vst.msk [vmem:[#allocation2 + $0x48] sm:$0xff] %vm244, 0.0
          %255 = vst.msk [vmem:[#allocation2 + $0x50] sm:$0xff] %vm244, 0.0
          %256 = vst.msk [vmem:[#allocation2 + $0x58] sm:$0xff] %vm244, 0.0
          %257 = vst.msk [vmem:[#allocation2 + $0x60] sm:$0xff] %vm244, 0.0
          %258 = vst.msk [vmem:[#allocation2 + $0x68] sm:$0xff] %vm244, 0.0
          %259 = vst.msk [vmem:[#allocation2 + $0x70] sm:$0xff] %vm244, 0.0
          %260 = vst.msk [vmem:[#allocation2 + $0x78] sm:$0xff] %vm244, 0.0
        $region40: #{tgcn_graph_convolution.1} parent=35 // pred_fallthru
          _
        %v261 = vld [vmem:[%s231] sm:$0xff]
        %v262 = vld [vmem:[%s231 + $0x8] sm:$0xff]
        %v263 = vld [vmem:[%s231 + $0x10] sm:$0xff]
        %v264 = vld [vmem:[%s231 + $0x18] sm:$0xff]
        %v265 = vld [vmem:[%s231 + $0x20] sm:$0xff]
        %v266 = vld [vmem:[%s231 + $0x28] sm:$0xff]
        %v267 = vld [vmem:[%s231 + $0x30] sm:$0xff]
        %v268 = vld [vmem:[%s231 + $0x38] sm:$0xff]
        %v269 = vld [vmem:[#allocation2] sm:$0xff]
        %v270 = vld [vmem:[#allocation2 + $0x8] sm:$0xff]
        %v271 = vld [vmem:[#allocation2 + $0x10] sm:$0xff]
        %v272 = vld [vmem:[#allocation2 + $0x18] sm:$0xff]
        %v273 = vld [vmem:[#allocation2 + $0x20] sm:$0xff]
        %v274 = vld [vmem:[#allocation2 + $0x28] sm:$0xff]
        %v275 = vld [vmem:[#allocation2 + $0x30] sm:$0xff]
        %v276 = vld [vmem:[#allocation2 + $0x38] sm:$0xff]
        %v277 = vld [vmem:[%s237] sm:$0xff]
        %v278 = vld [vmem:[%s237 + $0x8] sm:$0xff]
        %v279 = vld [vmem:[%s237 + $0x10] sm:$0xff]
        %v280 = vld [vmem:[%s237 + $0x18] sm:$0xff]
        %v281 = vld [vmem:[%s237 + $0x20] sm:$0xff]
        %v282 = vld [vmem:[%s237 + $0x28] sm:$0xff]
        %v283 = vld [vmem:[%s237 + $0x30] sm:$0xff]
        %v284 = vld [vmem:[%s237 + $0x38] sm:$0xff]
        %v285 = vld [vmem:[%s237 + $0x40] sm:$0xff]
        %v286 = vld [vmem:[%s237 + $0x48] sm:$0xff]
        %v287 = vld [vmem:[%s237 + $0x50] sm:$0xff]
        %v288 = vld [vmem:[%s237 + $0x58] sm:$0xff]
        %v289 = vld [vmem:[%s237 + $0x60] sm:$0xff]
        %v290 = vld [vmem:[%s237 + $0x68] sm:$0xff]
        %v291 = vld [vmem:[%s237 + $0x70] sm:$0xff]
        %v292 = vld [vmem:[%s237 + $0x78] sm:$0xff]
        %293 = vmatpush.msra.mxu0 %v292
        %294 = vmatpush.msra.mxu0 %v291
        %295 = vmatpush.msra.mxu0 %v290
        %296 = vmatpush.msra.mxu0 %v289
        %297 = vmatpush.msra.mxu0 %v288
        %298 = vmatpush.msra.mxu0 %v287
        %299 = vmatpush.msra.mxu0 %v286
        %300 = vmatpush.msra.mxu0 %v285
        %301 = vmatpush.msra.mxu0 %v284
        %302 = vmatpush.msra.mxu0 %v283
        %303 = vmatpush.msra.mxu0 %v282
        %304 = vmatpush.msra.mxu0 %v281
        %305 = vmatpush.msra.mxu0 %v280
        %306 = vmatpush.msra.mxu0 %v279
        %307 = vmatpush.msra.mxu0 %v278
        %308 = vmatpush.msra.mxu0 %v277
        %309 = vmatmul.f32.gmra.mxu0 %v261
        %v310 = vpop.f32.mrf.mxu0
        %v311 = vadd.f32 0.0, %v310
        %312 = vmatmul.f32.gmra.mxu0 %v262
        %v313 = vpop.f32.mrf.mxu0
        %v314 = vadd.f32 0.0, %v313
        %315 = vmatmul.f32.gmra.mxu0 %v263
        %v316 = vpop.f32.mrf.mxu0
        %v317 = vadd.f32 0.0, %v316
        %318 = vmatmul.f32.gmra.mxu0 %v264
        %v319 = vpop.f32.mrf.mxu0
        %v320 = vadd.f32 0.0, %v319
        %321 = vmatmul.f32.gmra.mxu0 %v265
        %v322 = vpop.f32.mrf.mxu0
        %v323 = vadd.f32 0.0, %v322
        %324 = vmatmul.f32.gmra.mxu0 %v266
        %v325 = vpop.f32.mrf.mxu0
        %v326 = vadd.f32 0.0, %v325
        %327 = vmatmul.f32.gmra.mxu0 %v267
        %v328 = vpop.f32.mrf.mxu0
        %v329 = vadd.f32 0.0, %v328
        %330 = vmatmul.f32.gmra.mxu0 %v268
        %v331 = vpop.f32.mrf.mxu0
        %v332 = vadd.f32 0.0, %v331
        %333 = vdwg.mxu0
        %v334 = vadd.f32 %v269, %v311
        %v335 = vadd.f32 %v270, %v314
        %v336 = vadd.f32 %v271, %v317
        %v337 = vadd.f32 %v272, %v320
        %v338 = vadd.f32 %v273, %v323
        %v339 = vadd.f32 %v274, %v326
        %v340 = vadd.f32 %v275, %v329
        %v341 = vadd.f32 %v276, %v332
        %vm342 = vcmask 269312
        %343 = vst.msk [vmem:[#allocation2] sm:$0xff] %vm342, %v334
        %344 = vst.msk [vmem:[#allocation2 + $0x8] sm:$0xff] %vm342, %v335
        %345 = vst.msk [vmem:[#allocation2 + $0x10] sm:$0xff] %vm342, %v336
        %346 = vst.msk [vmem:[#allocation2 + $0x18] sm:$0xff] %vm342, %v337
        %347 = vst.msk [vmem:[#allocation2 + $0x20] sm:$0xff] %vm342, %v338
        %348 = vst.msk [vmem:[#allocation2 + $0x28] sm:$0xff] %vm342, %v339
        %349 = vst.msk [vmem:[#allocation2 + $0x30] sm:$0xff] %vm342, %v340
        %350 = vst.msk [vmem:[#allocation2 + $0x38] sm:$0xff] %vm342, %v341
        %s351 = scalar_lea.vmem [#allocation2], 64
        %v352 = vld [vmem:[%s351] sm:$0xff]
        %v353 = vld [vmem:[%s351 + $0x8] sm:$0xff]
        %v354 = vld [vmem:[%s351 + $0x10] sm:$0xff]
        %v355 = vld [vmem:[%s351 + $0x18] sm:$0xff]
        %v356 = vld [vmem:[%s351 + $0x20] sm:$0xff]
        %v357 = vld [vmem:[%s351 + $0x28] sm:$0xff]
        %v358 = vld [vmem:[%s351 + $0x30] sm:$0xff]
        %v359 = vld [vmem:[%s351 + $0x38] sm:$0xff]
        %s360 = scalar_lea.vmem %s237, 128
        %v361 = vld [vmem:[%s360] sm:$0xff]
        %v362 = vld [vmem:[%s360 + $0x8] sm:$0xff]
        %v363 = vld [vmem:[%s360 + $0x10] sm:$0xff]
        %v364 = vld [vmem:[%s360 + $0x18] sm:$0xff]
        %v365 = vld [vmem:[%s360 + $0x20] sm:$0xff]
        %v366 = vld [vmem:[%s360 + $0x28] sm:$0xff]
        %v367 = vld [vmem:[%s360 + $0x30] sm:$0xff]
        %v368 = vld [vmem:[%s360 + $0x38] sm:$0xff]
        %v369 = vld [vmem:[%s360 + $0x40] sm:$0xff]
        %v370 = vld [vmem:[%s360 + $0x48] sm:$0xff]
        %v371 = vld [vmem:[%s360 + $0x50] sm:$0xff]
        %v372 = vld [vmem:[%s360 + $0x58] sm:$0xff]
        %v373 = vld [vmem:[%s360 + $0x60] sm:$0xff]
        %v374 = vld [vmem:[%s360 + $0x68] sm:$0xff]
        %v375 = vld [vmem:[%s360 + $0x70] sm:$0xff]
        %v376 = vld [vmem:[%s360 + $0x78] sm:$0xff]
        %377 = vmatpush.msra.mxu0 %v376
        %378 = vmatpush.msra.mxu0 %v375
        %379 = vmatpush.msra.mxu0 %v374
        %380 = vmatpush.msra.mxu0 %v373
        %381 = vmatpush.msra.mxu0 %v372
        %382 = vmatpush.msra.mxu0 %v371
        %383 = vmatpush.msra.mxu0 %v370
        %384 = vmatpush.msra.mxu0 %v369
        %385 = vmatpush.msra.mxu0 %v368
        %386 = vmatpush.msra.mxu0 %v367
        %387 = vmatpush.msra.mxu0 %v366
        %388 = vmatpush.msra.mxu0 %v365
        %389 = vmatpush.msra.mxu0 %v364
        %390 = vmatpush.msra.mxu0 %v363
        %391 = vmatpush.msra.mxu0 %v362
        %392 = vmatpush.msra.mxu0 %v361
        %393 = vmatmul.f32.gmra.mxu0 %v261
        %v394 = vpop.f32.mrf.mxu0
        %v395 = vadd.f32 0.0, %v394
        %396 = vmatmul.f32.gmra.mxu0 %v262
        %v397 = vpop.f32.mrf.mxu0
        %v398 = vadd.f32 0.0, %v397
        %399 = vmatmul.f32.gmra.mxu0 %v263
        %v400 = vpop.f32.mrf.mxu0
        %v401 = vadd.f32 0.0, %v400
        %402 = vmatmul.f32.gmra.mxu0 %v264
        %v403 = vpop.f32.mrf.mxu0
        %v404 = vadd.f32 0.0, %v403
        %405 = vmatmul.f32.gmra.mxu0 %v265
        %v406 = vpop.f32.mrf.mxu0
        %v407 = vadd.f32 0.0, %v406
        %408 = vmatmul.f32.gmra.mxu0 %v266
        %v409 = vpop.f32.mrf.mxu0
        %v410 = vadd.f32 0.0, %v409
        %411 = vmatmul.f32.gmra.mxu0 %v267
        %v412 = vpop.f32.mrf.mxu0
        %v413 = vadd.f32 0.0, %v412
        %414 = vmatmul.f32.gmra.mxu0 %v268
        %v415 = vpop.f32.mrf.mxu0
        %v416 = vadd.f32 0.0, %v415
        %417 = vdwg.mxu0
        %v418 = vadd.f32 %v352, %v395
        %v419 = vadd.f32 %v353, %v398
        %v420 = vadd.f32 %v354, %v401
        %v421 = vadd.f32 %v355, %v404
        %v422 = vadd.f32 %v356, %v407
        %v423 = vadd.f32 %v357, %v410
        %v424 = vadd.f32 %v358, %v413
        %v425 = vadd.f32 %v359, %v416
        %426 = vst.msk [vmem:[%s351] sm:$0xff] %vm342, %v418
        %427 = vst.msk [vmem:[%s351 + $0x8] sm:$0xff] %vm342, %v419
        %428 = vst.msk [vmem:[%s351 + $0x10] sm:$0xff] %vm342, %v420
        %429 = vst.msk [vmem:[%s351 + $0x18] sm:$0xff] %vm342, %v421
        %430 = vst.msk [vmem:[%s351 + $0x20] sm:$0xff] %vm342, %v422
        %431 = vst.msk [vmem:[%s351 + $0x28] sm:$0xff] %vm342, %v423
        %432 = vst.msk [vmem:[%s351 + $0x30] sm:$0xff] %vm342, %v424
        %433 = vst.msk [vmem:[%s351 + $0x38] sm:$0xff] %vm342, %v425
        // Predicated region
        $region41: #{tgcn_graph_convolution.1} parent=35 // pred_check
          %p434 = pneg %p240
        $region42: #{tgcn_graph_convolution.1} parent=35 // pred_check_branch
          %436 = sbr.rel (%p434) target = $region44
        $region43: #{tgcn_graph_convolution.1} parent=35 // pred_region
          %v437 = vld [vmem:[%s2] sm:$0xff]
          %v438 = vld [vmem:[%s2 + $0x8] sm:$0xff]
          %v439 = vld [vmem:[%s2 + $0x10] sm:$0xff]
          %v440 = vld [vmem:[%s2 + $0x18] sm:$0xff]
          %v441 = vld [vmem:[%s2 + $0x20] sm:$0x1]
          %v442 = vld [vmem:[%s3] sm:$0x1]
          %v443 = vld [vmem:[#allocation2] sm:$0xff]
          %v444 = vld [vmem:[#allocation2 + $0x8] sm:$0xff]
          %v445 = vld [vmem:[#allocation2 + $0x10] sm:$0xff]
          %v446 = vld [vmem:[#allocation2 + $0x18] sm:$0xff]
          %v447 = vld [vmem:[#allocation2 + $0x20] sm:$0xff]
          %v448 = vld [vmem:[#allocation2 + $0x28] sm:$0xff]
          %v449 = vld [vmem:[#allocation2 + $0x30] sm:$0xff]
          %v450 = vld [vmem:[#allocation2 + $0x38] sm:$0xff]
          %v452 = vperm.slane %v442, 0
          %v455 = vsel %vm342, %v443, 0
          %v458 = vsel %vm342, %v444, 0
          %v461 = vsel %vm342, %v445, 0
          %v464 = vsel %vm342, %v446, 0
          %v467 = vsel %vm342, %v447, 0
          %v470 = vsel %vm342, %v448, 0
          %v473 = vsel %vm342, %v449, 0
          %v476 = vsel %vm342, %v450, 0
          %vm478 = vcmask 1040384
          %v480 = vsel %vm478, %v441, 0
          %482 = vmatpush.msra.mxu0 0.0
          %483 = vmatpush.msra.mxu0 0.0
          %484 = vmatpush.msra.mxu0 0.0
          %485 = vmatpush.msra.mxu0 0.0
          %486 = vmatpush.msra.mxu0 0.0
          %487 = vmatpush.msra.mxu0 0.0
          %488 = vmatpush.msra.mxu0 0.0
          %489 = vmatpush.msra.mxu0 0.0
          %490 = vmatpush.msra.mxu0 0.0
          %491 = vmatpush.msra.mxu0 0.0
          %492 = vmatpush.msra.mxu0 0.0
          %493 = vmatpush.msra.mxu0 %v480
          %494 = vmatpush.msra.mxu0 %v440
          %495 = vmatpush.msra.mxu0 %v439
          %496 = vmatpush.msra.mxu0 %v438
          %497 = vmatpush.msra.mxu0 %v437
          %498 = vmatmul.f32.gmra.mxu0 %v455
          %v499 = vpop.f32.mrf.mxu0
          %v500 = vadd.f32 %v452, %v499
          %501 = vmatmul.f32.gmra.mxu0 %v458
          %v502 = vpop.f32.mrf.mxu0
          %v503 = vadd.f32 %v452, %v502
          %504 = vmatmul.f32.gmra.mxu0 %v461
          %v505 = vpop.f32.mrf.mxu0
          %v506 = vadd.f32 %v452, %v505
          %507 = vmatmul.f32.gmra.mxu0 %v464
          %v508 = vpop.f32.mrf.mxu0
          %v509 = vadd.f32 %v452, %v508
          %510 = vmatmul.f32.gmra.mxu0 %v467
          %v511 = vpop.f32.mrf.mxu0
          %v512 = vadd.f32 %v452, %v511
          %513 = vmatmul.f32.gmra.mxu0 %v470
          %v514 = vpop.f32.mrf.mxu0
          %v515 = vadd.f32 %v452, %v514
          %516 = vmatmul.f32.gmra.mxu0 %v473
          %v517 = vpop.f32.mrf.mxu0
          %v518 = vadd.f32 %v452, %v517
          %519 = vmatmul.f32.gmra.mxu0 %v476
          %v520 = vpop.f32.mrf.mxu0
          %v521 = vadd.f32 %v452, %v520
          %522 = vdwg.mxu0
          %vm523 = vcmask 64512
          %524 = vst.msk [vmem:[%s223] sm:$0xff] %vm523, %v500
          %525 = vst.msk [vmem:[%s223 + $0x8] sm:$0xff] %vm523, %v503
          %526 = vst.msk [vmem:[%s223 + $0x10] sm:$0xff] %vm523, %v506
          %527 = vst.msk [vmem:[%s223 + $0x18] sm:$0xff] %vm523, %v509
          %528 = vst.msk [vmem:[%s223 + $0x20] sm:$0xff] %vm523, %v512
          %529 = vst.msk [vmem:[%s223 + $0x28] sm:$0xff] %vm523, %v515
          %530 = vst.msk [vmem:[%s223 + $0x30] sm:$0xff] %vm523, %v518
          %531 = vst.msk [vmem:[%s223 + $0x38] sm:$0xff] %vm523, %v521
          %v532 = vld [vmem:[%s351] sm:$0xff]
          %v533 = vld [vmem:[%s351 + $0x8] sm:$0xff]
          %v534 = vld [vmem:[%s351 + $0x10] sm:$0xff]
          %v535 = vld [vmem:[%s351 + $0x18] sm:$0xff]
          %v536 = vld [vmem:[%s351 + $0x20] sm:$0xff]
          %v537 = vld [vmem:[%s351 + $0x28] sm:$0xff]
          %v538 = vld [vmem:[%s351 + $0x30] sm:$0xff]
          %v539 = vld [vmem:[%s351 + $0x38] sm:$0xff]
          %v541 = vsel %vm342, %v532, 0
          %v544 = vsel %vm342, %v533, 0
          %v547 = vsel %vm342, %v534, 0
          %v550 = vsel %vm342, %v535, 0
          %v553 = vsel %vm342, %v536, 0
          %v556 = vsel %vm342, %v537, 0
          %v559 = vsel %vm342, %v538, 0
          %v562 = vsel %vm342, %v539, 0
          %564 = vmatpush.msra.mxu0 0.0
          %565 = vmatpush.msra.mxu0 0.0
          %566 = vmatpush.msra.mxu0 0.0
          %567 = vmatpush.msra.mxu0 0.0
          %568 = vmatpush.msra.mxu0 0.0
          %569 = vmatpush.msra.mxu0 0.0
          %570 = vmatpush.msra.mxu0 0.0
          %571 = vmatpush.msra.mxu0 0.0
          %572 = vmatpush.msra.mxu0 0.0
          %573 = vmatpush.msra.mxu0 0.0
          %574 = vmatpush.msra.mxu0 0.0
          %575 = vmatpush.msra.mxu0 %v480
          %576 = vmatpush.msra.mxu0 %v440
          %577 = vmatpush.msra.mxu0 %v439
          %578 = vmatpush.msra.mxu0 %v438
          %579 = vmatpush.msra.mxu0 %v437
          %580 = vmatmul.f32.gmra.mxu0 %v541
          %v581 = vpop.f32.mrf.mxu0
          %v582 = vadd.f32 %v452, %v581
          %583 = vmatmul.f32.gmra.mxu0 %v544
          %v584 = vpop.f32.mrf.mxu0
          %v585 = vadd.f32 %v452, %v584
          %586 = vmatmul.f32.gmra.mxu0 %v547
          %v587 = vpop.f32.mrf.mxu0
          %v588 = vadd.f32 %v452, %v587
          %589 = vmatmul.f32.gmra.mxu0 %v550
          %v590 = vpop.f32.mrf.mxu0
          %v591 = vadd.f32 %v452, %v590
          %592 = vmatmul.f32.gmra.mxu0 %v553
          %v593 = vpop.f32.mrf.mxu0
          %v594 = vadd.f32 %v452, %v593
          %595 = vmatmul.f32.gmra.mxu0 %v556
          %v596 = vpop.f32.mrf.mxu0
          %v597 = vadd.f32 %v452, %v596
          %598 = vmatmul.f32.gmra.mxu0 %v559
          %v599 = vpop.f32.mrf.mxu0
          %v600 = vadd.f32 %v452, %v599
          %601 = vmatmul.f32.gmra.mxu0 %v562
          %v602 = vpop.f32.mrf.mxu0
          %v603 = vadd.f32 %v452, %v602
          %604 = vdwg.mxu0
          %s605 = scalar_lea.vmem %s223, 64 [#allocation3]
          %606 = vst.msk [vmem:[%s605] sm:$0xff] %vm523, %v582
          %607 = vst.msk [vmem:[%s605 + $0x8] sm:$0xff] %vm523, %v585
          %608 = vst.msk [vmem:[%s605 + $0x10] sm:$0xff] %vm523, %v588
          %609 = vst.msk [vmem:[%s605 + $0x18] sm:$0xff] %vm523, %v591
          %610 = vst.msk [vmem:[%s605 + $0x20] sm:$0xff] %vm523, %v594
          %611 = vst.msk [vmem:[%s605 + $0x28] sm:$0xff] %vm523, %v597
          %612 = vst.msk [vmem:[%s605 + $0x30] sm:$0xff] %vm523, %v600
          %613 = vst.msk [vmem:[%s605 + $0x38] sm:$0xff] %vm523, %v603
        $region44: #{tgcn_graph_convolution.1} parent=35 // pred_fallthru
          _
        %s614 = sand.u32 %s131, 1
        %s615 = sand.u32 %s131, 1
        %s616 = smul.addr %s615, 128
        %s617 = scalar_lea.vmem [#allocation3], %s616
        // Predicated region
        $region45: #{tgcn_graph_convolution.1} parent=35 // pred_check
          %p618 = pneg %p141
        $region46: #{tgcn_graph_convolution.1} parent=35 // pred_check_branch
          %620 = sbr.rel (%p618) target = $region48
        $region47: #{tgcn_graph_convolution.1} parent=35 // pred_region
          %s621 = smul.u32 8, %s19
          %s622 = smul.addr %s621, 8
          %s623 = scalar_lea.vmem %s4, %s622
          // Predicated region
          $region49: #{tgcn_graph_convolution.1} parent=47 // pred_check
            _
          $region50: #{tgcn_graph_convolution.1} parent=47 // pred_check_branch
            %625 = sbr.rel (0) target = $region52
          $region51: #{tgcn_graph_convolution.1} parent=47 // pred_region
            // Predicated region
            $region53: #{tgcn_graph_convolution.1} parent=51 // pred_check
              _
            $region54: #{tgcn_graph_convolution.1} parent=51 // pred_check_branch
              %627 = sbr.rel (0) target = $region56
            $region55: #{tgcn_graph_convolution.1} parent=51 // pred_region
              // Predicated region
              $region68: #{tgcn_graph_convolution.1} parent=55 // pred_check
                _
              $region69: #{tgcn_graph_convolution.1} parent=55 // pred_check_branch
                %673 = sbr.rel (0) target = $region71
              $region70: #{tgcn_graph_convolution.1} parent=55 // pred_region
                loop: start=0, step=1, limit=1
                $region72: #{tgcn_graph_convolution.1} parent=70 // loop_pre_header
                  _
                $region73: #{tgcn_graph_convolution.1} parent=70 // loop_header
                  %s675 = sphi 0, %s679
                  %p676 = scmp.ge.s32.totalorder %s675, 1
                  %s680 = sphi %s617, %s617
                  %s681 = sphi %s623, %s623
                $region74: #{tgcn_graph_convolution.1} parent=70 // loop_header_branch
                  %678 = sbr.rel (%p676) target = $region78
                $region75: #{tgcn_graph_convolution.1} parent=70 // loop_body
                  %v682 = vld [vmem:[%s680] sm:$0xff]
                  %683 = vst [vmem:[%s681] sm:$0xff] %v682
                  %v684 = vld [vmem:[%s680 + $0x8] sm:$0xff]
                  %685 = vst [vmem:[%s681 + $0x8] sm:$0xff] %v684
                  %v686 = vld [vmem:[%s680 + $0x10] sm:$0xff]
                  %687 = vst [vmem:[%s681 + $0x10] sm:$0xff] %v686
                  %v688 = vld [vmem:[%s680 + $0x18] sm:$0xff]
                  %689 = vst [vmem:[%s681 + $0x18] sm:$0xff] %v688
                  %v690 = vld [vmem:[%s680 + $0x20] sm:$0xff]
                  %691 = vst [vmem:[%s681 + $0x20] sm:$0xff] %v690
                  %v692 = vld [vmem:[%s680 + $0x28] sm:$0xff]
                  %693 = vst [vmem:[%s681 + $0x28] sm:$0xff] %v692
                  %v694 = vld [vmem:[%s680 + $0x30] sm:$0xff]
                  %695 = vst [vmem:[%s681 + $0x30] sm:$0xff] %v694
                  %v696 = vld [vmem:[%s680 + $0x38] sm:$0xff]
                  %697 = vst [vmem:[%s681 + $0x38] sm:$0xff] %v696
                  %v698 = vld [vmem:[%s680 + $0x40] sm:$0xff]
                  %699 = vst [vmem:[%s681 + $0x80] sm:$0xff] %v698
                  %v700 = vld [vmem:[%s680 + $0x48] sm:$0xff]
                  %701 = vst [vmem:[%s681 + $0x88] sm:$0xff] %v700
                  %v702 = vld [vmem:[%s680 + $0x50] sm:$0xff]
                  %703 = vst [vmem:[%s681 + $0x90] sm:$0xff] %v702
                  %v704 = vld [vmem:[%s680 + $0x58] sm:$0xff]
                  %705 = vst [vmem:[%s681 + $0x98] sm:$0xff] %v704
                  %v706 = vld [vmem:[%s680 + $0x60] sm:$0xff]
                  %707 = vst [vmem:[%s681 + $0xa0] sm:$0xff] %v706
                  %v708 = vld [vmem:[%s680 + $0x68] sm:$0xff]
                  %709 = vst [vmem:[%s681 + $0xa8] sm:$0xff] %v708
                  %v710 = vld [vmem:[%s680 + $0x70] sm:$0xff]
                  %711 = vst [vmem:[%s681 + $0xb0] sm:$0xff] %v710
                  %v712 = vld [vmem:[%s680 + $0x78] sm:$0xff]
                  %713 = vst [vmem:[%s681 + $0xb8] sm:$0xff] %v712
                $region76: #{tgcn_graph_convolution.1} parent=70 // loop_footer
                  %s679 = sadd.s32 1, %s675
                $region77: #{tgcn_graph_convolution.1} parent=70 // loop_footer_branch
                  %674 = sbr.rel target = $region73
                $region78: #{tgcn_graph_convolution.1} parent=70 // loop_exit
                  _
              $region71: #{tgcn_graph_convolution.1} parent=55 // pred_fallthru
                _
              // Predicated region
              $region79: #{tgcn_graph_convolution.1} parent=55 // pred_check
                _
              $region80: #{tgcn_graph_convolution.1} parent=55 // pred_check_branch
                %715 = sbr.rel target = $region82
              $region81: #{tgcn_graph_convolution.1} parent=55 // pred_region
                _
              $region82: #{tgcn_graph_convolution.1} parent=55 // pred_fallthru
                _
            $region56: #{tgcn_graph_convolution.1} parent=51 // pred_fallthru
              _
            // Predicated region
            $region57: #{tgcn_graph_convolution.1} parent=51 // pred_check
              _
            $region58: #{tgcn_graph_convolution.1} parent=51 // pred_check_branch
              %629 = sbr.rel target = $region60
            $region59: #{tgcn_graph_convolution.1} parent=51 // pred_region
              %s631 = ssub.s32 256, 1
              loop: start=0, step=1, limit=1
              $region61: #{tgcn_graph_convolution.1} parent=59 // loop_pre_header
                _
              $region62: #{tgcn_graph_convolution.1} parent=59 // loop_header
                %s633 = sphi 0, %s637
                %p634 = scmp.ge.s32.totalorder %s633, 1
                %s638 = sphi %s617, %s617
                %s639 = sphi %s623, %s623
              $region63: #{tgcn_graph_convolution.1} parent=59 // loop_header_branch
                %636 = sbr.rel (%p634) target = $region67
              $region64: #{tgcn_graph_convolution.1} parent=59 // loop_body
                %v640 = vld [vmem:[%s638] sm:%s631]
                %641 = vst [vmem:[%s639] sm:%s631] %v640
                %v642 = vld [vmem:[%s638 + $0x8] sm:%s631]
                %643 = vst [vmem:[%s639 + $0x8] sm:%s631] %v642
                %v644 = vld [vmem:[%s638 + $0x10] sm:%s631]
                %645 = vst [vmem:[%s639 + $0x10] sm:%s631] %v644
                %v646 = vld [vmem:[%s638 + $0x18] sm:%s631]
                %647 = vst [vmem:[%s639 + $0x18] sm:%s631] %v646
                %v648 = vld [vmem:[%s638 + $0x20] sm:%s631]
                %649 = vst [vmem:[%s639 + $0x20] sm:%s631] %v648
                %v650 = vld [vmem:[%s638 + $0x28] sm:%s631]
                %651 = vst [vmem:[%s639 + $0x28] sm:%s631] %v650
                %v652 = vld [vmem:[%s638 + $0x30] sm:%s631]
                %653 = vst [vmem:[%s639 + $0x30] sm:%s631] %v652
                %v654 = vld [vmem:[%s638 + $0x38] sm:%s631]
                %655 = vst [vmem:[%s639 + $0x38] sm:%s631] %v654
                %v656 = vld [vmem:[%s638 + $0x40] sm:%s631]
                %657 = vst [vmem:[%s639 + $0x80] sm:%s631] %v656
                %v658 = vld [vmem:[%s638 + $0x48] sm:%s631]
                %659 = vst [vmem:[%s639 + $0x88] sm:%s631] %v658
                %v660 = vld [vmem:[%s638 + $0x50] sm:%s631]
                %661 = vst [vmem:[%s639 + $0x90] sm:%s631] %v660
                %v662 = vld [vmem:[%s638 + $0x58] sm:%s631]
                %663 = vst [vmem:[%s639 + $0x98] sm:%s631] %v662
                %v664 = vld [vmem:[%s638 + $0x60] sm:%s631]
                %665 = vst [vmem:[%s639 + $0xa0] sm:%s631] %v664
                %v666 = vld [vmem:[%s638 + $0x68] sm:%s631]
                %667 = vst [vmem:[%s639 + $0xa8] sm:%s631] %v666
                %v668 = vld [vmem:[%s638 + $0x70] sm:%s631]
                %669 = vst [vmem:[%s639 + $0xb0] sm:%s631] %v668
                %v670 = vld [vmem:[%s638 + $0x78] sm:%s631]
                %671 = vst [vmem:[%s639 + $0xb8] sm:%s631] %v670
              $region65: #{tgcn_graph_convolution.1} parent=59 // loop_footer
                %s637 = sadd.s32 1, %s633
              $region66: #{tgcn_graph_convolution.1} parent=59 // loop_footer_branch
                %632 = sbr.rel target = $region62
              $region67: #{tgcn_graph_convolution.1} parent=59 // loop_exit
                _
            $region60: #{tgcn_graph_convolution.1} parent=51 // pred_fallthru
              _
          $region52: #{tgcn_graph_convolution.1} parent=47 // pred_fallthru
            _
          %716 = vnop
        $region48: #{tgcn_graph_convolution.1} parent=35 // pred_fallthru
          _
      $region36: #{tgcn_graph_convolution.1} parent=5 // pred_fallthru
        _
      %p717 = scmp.le.s32.totalorder 2, %s10
      // Predicated region
      $region83: #{tgcn_graph_convolution.1} parent=5 // pred_check
        %p718 = pneg %p717
      $region84: #{tgcn_graph_convolution.1} parent=5 // pred_check_branch
        %720 = sbr.rel (%p718) target = $region86
      $region85: #{tgcn_graph_convolution.1} parent=5 // pred_region
        %s721 = ssub.s32 %s10, 2
        // Predicated region
        $region87: #{tgcn_graph_convolution.1} parent=85 // pred_check
          %p722 = pneg %p147
        $region88: #{tgcn_graph_convolution.1} parent=85 // pred_check_branch
          %724 = sbr.rel (%p722) target = $region90
        $region89: #{tgcn_graph_convolution.1} parent=85 // pred_region
          %s725 = sand.u32 %s132, 1
          %s726 = sand.u32 %s132, 1
          %s727 = smul.addr %s726, 128
          %s728 = scalar_lea.vmem [#allocation3], %s727
        $region90: #{tgcn_graph_convolution.1} parent=85 // pred_fallthru
          _
      $region86: #{tgcn_graph_convolution.1} parent=5 // pred_fallthru
        _
    $region6: #{tgcn_graph_convolution.1} parent=1 // loop_footer
      %s14 = sadd.s32 1, %s10
    $region7: #{tgcn_graph_convolution.1} parent=1 // loop_footer_branch
      %9 = sbr.rel target = $region3
    $region8: #{tgcn_graph_convolution.1} parent=1 // loop_exit
      _

</llo_original>
